<compile_context>
chip_gen: v7x
topology: tpu7x:2x2x1
jax: 0.10.0
libtpu: 0.0.40
codegen_flags: <defaults>
</compile_context>

<pallas_src>
import jax
import jax.numpy as jnp
from jax.experimental import pallas as pl
from jax.experimental.pallas import tpu as pltpu


def _round_up(x: int, m: int) -> int:
    return (x + m - 1) // m * m


def linear_kernel_single_k(x_ref, w_ref, b_ref, o_ref):
    # Whole K fits in one tile: fuse matmul + bias + cast, no scratch.
    # x_ref: (tm, K), w_ref: (K, tn), b_ref: (1, tn), o_ref: (tm, tn)
    acc = jnp.dot(x_ref[...], w_ref[...], preferred_element_type=jnp.float32)
    o_ref[...] = (acc + b_ref[...]).astype(o_ref.dtype)


def linear_kernel_multi_k(x_ref, w_ref, b_ref, o_ref, acc_ref):
    # x_ref: (tm, tk), w_ref: (tk, tn), b_ref: (1, tn), o_ref: (tm, tn)
    # acc_ref: (tm, tn) f32 scratch; K-reduction runs along grid axis 2.
    k = pl.program_id(2)

    @pl.when(k == 0)
    def _init():
        acc_ref[...] = jnp.zeros_like(acc_ref)

    acc_ref[...] += jnp.dot(
        x_ref[...], w_ref[...], preferred_element_type=jnp.float32
    )

    @pl.when(k == pl.num_programs(2) - 1)
    def _finalize():
        # Bias is added exactly once (last K step), single cast at the end.
        o_ref[...] = (acc_ref[...] + b_ref[...]).astype(o_ref.dtype)


def _pick_tiles(m: int, k: int, n: int):
    # MXU/lane-friendly tiles that fit comfortably in VMEM (v7x: 64 MiB)
    # when double-buffered; degrade to a single (8, 128)-aligned block at
    # toy shapes like Net's 10x10 linear.
    tm = min(_round_up(m, 8), 256)
    tk = min(_round_up(k, 128), 512)
    tn = min(_round_up(n, 128), 256)
    return tm, tk, tn


@jax.jit
def net_forward(x, w, b):
    """Pallas implementation of Net.forward: flatten -> x @ W + b.

    x: (B, ...) -- flattened to (B, IN) like xb.view(xb.size(0), -1)
    w: (IN, OUT) weight (already transposed vs PyTorch's (OUT, IN))
    b: (OUT,) bias
    """
    batch = x.shape[0]
    xb = x.reshape(batch, -1)  # glue: view/flatten
    in_f = xb.shape[1]
    out_f = w.shape[1]

    tm, tk, tn = _pick_tiles(batch, in_f, out_f)
    mp = _round_up(batch, tm)
    kp = _round_up(in_f, tk)
    np_ = _round_up(out_f, tn)

    # Zero-pad to aligned shapes: padded K columns contribute zeros to the
    # accumulation, padded M/N rows/cols are sliced off after the call.
    xb_p = jnp.pad(xb, ((0, mp - batch), (0, kp - in_f)))
    w_p = jnp.pad(w, ((0, kp - in_f), (0, np_ - out_f)))
    b_p = jnp.pad(b, (0, np_ - out_f)).reshape(1, np_)

    cost = pl.CostEstimate(
        flops=2 * mp * np_ * kp,
        transcendentals=0,
        bytes_accessed=4 * (mp * kp + kp * np_ + np_ + mp * np_),
    )

    if kp == tk:
        # Fast path: whole reduction in one tile -> 2-D grid, no scratch,
        # no conditionals, bias fused into the epilogue.
        out_p = pl.pallas_call(
            linear_kernel_single_k,
            out_shape=jax.ShapeDtypeStruct((mp, np_), xb.dtype),
            grid_spec=pltpu.PrefetchScalarGridSpec(
                num_scalar_prefetch=0,
                grid=(mp // tm, np_ // tn),
                in_specs=[
                    pl.BlockSpec((tm, kp), lambda i, j: (i, 0)),
                    pl.BlockSpec((kp, tn), lambda i, j: (0, j)),
                    pl.BlockSpec((1, tn), lambda i, j: (0, j)),
                ],
                out_specs=pl.BlockSpec((tm, tn), lambda i, j: (i, j)),
            ),
            compiler_params=pltpu.CompilerParams(
                dimension_semantics=("parallel", "parallel"),
                vmem_limit_bytes=32 * 1024 * 1024,
            ),
            cost_estimate=cost,
        )(xb_p, w_p, b_p)
    else:
        # General path: K-tiled reduction with f32 VMEM accumulator.
        out_p = pl.pallas_call(
            linear_kernel_multi_k,
            out_shape=jax.ShapeDtypeStruct((mp, np_), xb.dtype),
            grid_spec=pltpu.PrefetchScalarGridSpec(
                num_scalar_prefetch=0,
                grid=(mp // tm, np_ // tn, kp // tk),
                in_specs=[
                    pl.BlockSpec((tm, tk), lambda i, j, k: (i, k)),
                    pl.BlockSpec((tk, tn), lambda i, j, k: (k, j)),
                    pl.BlockSpec((1, tn), lambda i, j, k: (0, j)),
                ],
                out_specs=pl.BlockSpec((tm, tn), lambda i, j, k: (i, j)),
                scratch_shapes=[pltpu.VMEM((tm, tn), jnp.float32)],
            ),
            compiler_params=pltpu.CompilerParams(
                dimension_semantics=("parallel", "parallel", "arbitrary"),
                vmem_limit_bytes=32 * 1024 * 1024,
            ),
            cost_estimate=cost,
        )(xb_p, w_p, b_p)

    return out_p[:batch, :out_f]


if __name__ == "__main__":
    key = jax.random.PRNGKey(0)
    k_x, k_w, k_b = jax.random.split(key, 3)

    batch, in_features, out_features = 2, 10, 10

    # Deterministic params mimicking nn.Linear(10, 10) default init:
    # U(-1/sqrt(in), 1/sqrt(in))
    bound = 1.0 / jnp.sqrt(jnp.float32(in_features))
    w_pt = jax.random.uniform(
        k_w, (out_features, in_features), jnp.float32, -bound, bound
    )  # PyTorch layout (OUT, IN)
    b = jax.random.uniform(k_b, (out_features,), jnp.float32, -bound, bound)
    w = w_pt.T  # (IN, OUT) for x @ W

    x = jax.random.normal(k_x, (batch, in_features), jnp.float32)

    out = net_forward(x, w, b)
    out = jax.block_until_ready(out)

    # Reference check against plain JAX (same semantics as PyTorch Linear).
    ref = x.reshape(batch, -1) @ w + b
    assert out.shape == (batch, out_features)
    assert jnp.allclose(out, ref, atol=1e-5), "mismatch vs reference"

    print("KERNEL_OK")
</pallas_src>

<mosaic_0001>
module attributes {stable_mosaic.version = 11 : i64} {
  func.func @linear_kernel_single_k(%arg0: i32, %arg1: i32, %arg2: memref<8x128xf32, #tpu.memory_space<vmem>>, %arg3: memref<128x128xf32, #tpu.memory_space<vmem>>, %arg4: memref<1x128xf32, #tpu.memory_space<vmem>>, %arg5: memref<8x128xf32, #tpu.memory_space<vmem>>) attributes {dimension_semantics = [#tpu.dimension_semantics<parallel>, #tpu.dimension_semantics<parallel>], iteration_bounds = array<i64: 1, 1>, scalar_prefetch = 0 : i64, scratch_operands = 0 : i64, tpu.core_type = #tpu.core_type<tc>, window_params = [{transform_indices = @transform_0, window_bounds = array<i64: 8, 128>}, {transform_indices = @transform_1, window_bounds = array<i64: 128, 128>}, {transform_indices = @transform_2, window_bounds = array<i64: 1, 128>}, {transform_indices = @transform_3, window_bounds = array<i64: 8, 128>}]} {
    %c0 = arith.constant 0 : index
    %c0_0 = arith.constant 0 : index
    %0 = vector.load %arg2[%c0, %c0_0] : memref<8x128xf32, #tpu.memory_space<vmem>>, vector<8x128xf32>
    %c0_1 = arith.constant 0 : index
    %c0_2 = arith.constant 0 : index
    %1 = vector.load %arg3[%c0_1, %c0_2] : memref<128x128xf32, #tpu.memory_space<vmem>>, vector<128x128xf32>
    %cst = arith.constant dense<0.000000e+00> : vector<8x128xf32>
    %2 = tpu.matmul %0, %1, %cst {dimension_numbers = #tpu.dot_dimension_numbers<[1], [0], [0], [1], [0, 0, 1, 1], [], []>} : vector<8x128xf32>, vector<128x128xf32>, vector<8x128xf32> -> vector<8x128xf32>
    %c0_3 = arith.constant 0 : index
    %c0_4 = arith.constant 0 : index
    %3 = vector.load %arg4[%c0_3, %c0_4] : memref<1x128xf32, #tpu.memory_space<vmem>>, vector<1x128xf32>
    %4 = vector.broadcast %3 : vector<1x128xf32> to vector<8x128xf32>
    %5 = arith.addf %2, %4 : vector<8x128xf32>
    %c0_5 = arith.constant 0 : index
    %c0_6 = arith.constant 0 : index
    %6 = vector.load %arg5[%c0_5, %c0_6] : memref<8x128xf32, #tpu.memory_space<vmem>>, vector<8x128xf32>
    tpu.vector_store %arg5[%c0_5, %c0_6], %5 {strides = array<i32>} : memref<8x128xf32, #tpu.memory_space<vmem>>, vector<8x128xf32>,
    return
  }
  func.func @transform_0(%arg0: i32, %arg1: i32) -> (i32, i32) {
    %c0_i32 = arith.constant 0 : i32
    %c0_i32_0 = arith.constant 0 : i32
    return %arg0, %c0_i32 : i32, i32
  }
  func.func @transform_1(%arg0: i32, %arg1: i32) -> (i32, i32) {
    %c0_i32 = arith.constant 0 : i32
    %c0_i32_0 = arith.constant 0 : i32
    return %c0_i32, %arg1 : i32, i32
  }
  func.func @transform_2(%arg0: i32, %arg1: i32) -> (i32, i32) {
    %c0_i32 = arith.constant 0 : i32
    %c0_i32_0 = arith.constant 0 : i32
    return %c0_i32, %arg1 : i32, i32
  }
  func.func @transform_3(%arg0: i32, %arg1: i32) -> (i32, i32) {
    %c0_i32 = arith.constant 0 : i32
    return %arg0, %arg1 : i32, i32
  }
}

</mosaic_0001>

<llo_original>
// kernel: net_forward.1
$region0: #{net_forward.1}
  #allocation0 [shape = 'u32[]', space=smem, size = 0x4, offset = 0x4, fixed_abs, tag = 'smem constant byte address 0x4 - core index']
  #allocation1 [shape = 'u32[144,128]{1,0:T(1,128)}', space=vmem, size = 0x12000, scoped, tag = 'internal scratch']
  %s0 = inlined_call_operand.vmem [shape: f32[8,128], index: 0, kind: input, shape index: {}]
  %s1 = inlined_call_operand.vmem [shape: f32[128,128], index: 1, kind: input, shape index: {}]
  %s2 = inlined_call_operand.vmem [shape: f32[1,128], index: 2, kind: input, shape index: {}]
  %s3 = inlined_call_operand.vmem [shape: f32[8,128], index: 3, kind: output, shape index: {}]
  %s4 = sld [smem:[#allocation0]]
  $region22: #{net_forward.1} parent=0
    _
  %s6 = ssub.s32 1, %s4
  %s7 = scalar_select 0, %s6, %s4
  // Predicated region
  $region2: #{net_forward.1} parent=0 // pred_check
    _
  $region3: #{net_forward.1} parent=0 // pred_check_branch
    %9 = sbr.rel (0) target = $region5
  $region4: #{net_forward.1} parent=0 // pred_region
    _
  $region5: #{net_forward.1} parent=0 // pred_fallthru
    _
  // Predicated region
  $region6: #{net_forward.1} parent=0 // pred_check
    _
  $region7: #{net_forward.1} parent=0 // pred_check_branch
    %11 = sbr.rel (0) target = $region9
  $region8: #{net_forward.1} parent=0 // pred_region
    _
  $region9: #{net_forward.1} parent=0 // pred_fallthru
    _
  // Predicated region
  $region10: #{net_forward.1} parent=0 // pred_check
    _
  $region11: #{net_forward.1} parent=0 // pred_check_branch
    %13 = sbr.rel (0) target = $region13
  $region12: #{net_forward.1} parent=0 // pred_region
    _
  $region13: #{net_forward.1} parent=0 // pred_fallthru
    _
  %v14 = vld [vmem:[%s0] sm:$0xff]
  %v15 = vld [vmem:[%s1] sm:$0xff]
  %v16 = vld [vmem:[%s1 + $0x8] sm:$0xff]
  %v17 = vld [vmem:[%s1 + $0x10] sm:$0xff]
  %v18 = vld [vmem:[%s1 + $0x18] sm:$0xff]
  %v19 = vld [vmem:[%s1 + $0x20] sm:$0xff]
  %v20 = vld [vmem:[%s1 + $0x28] sm:$0xff]
  %v21 = vld [vmem:[%s1 + $0x30] sm:$0xff]
  %v22 = vld [vmem:[%s1 + $0x38] sm:$0xff]
  %v23 = vld [vmem:[%s1 + $0x40] sm:$0xff]
  %v24 = vld [vmem:[%s1 + $0x48] sm:$0xff]
  %v25 = vld [vmem:[%s1 + $0x50] sm:$0xff]
  %v26 = vld [vmem:[%s1 + $0x58] sm:$0xff]
  %v27 = vld [vmem:[%s1 + $0x60] sm:$0xff]
  %v28 = vld [vmem:[%s1 + $0x68] sm:$0xff]
  %v29 = vld [vmem:[%s1 + $0x70] sm:$0xff]
  %v30 = vld [vmem:[%s1 + $0x78] sm:$0xff]
  %v31 = vld [vmem:[%s2] sm:$0x1]
  %v33 = vlaneseq
  %v34 = vshrl.u32 %v33, 7
  %v35 = vsub.s32 0, %v34
  %v36 = vrot.slane %v31, %v35
  %38 = vmatprep.subr.mxu0 0.0
  %39 = vmatpush1.msra.mxu0 %v15
  %40 = vmatprep.subr.mxu0 0.0
  %41 = vmatpush1.msra.mxu0 %v16
  %42 = vmatprep.subr.mxu0 0.0
  %43 = vmatpush1.msra.mxu0 %v17
  %44 = vmatprep.subr.mxu0 0.0
  %45 = vmatpush1.msra.mxu0 %v18
  %46 = vmatprep.subr.mxu0 0.0
  %47 = vmatpush1.msra.mxu0 %v19
  %48 = vmatprep.subr.mxu0 0.0
  %49 = vmatpush1.msra.mxu0 %v20
  %50 = vmatprep.subr.mxu0 0.0
  %51 = vmatpush1.msra.mxu0 %v21
  %52 = vmatprep.subr.mxu0 0.0
  %53 = vmatpush1.msra.mxu0 %v22
  %54 = vmatprep.subr.mxu0 0.0
  %55 = vmatpush1.msra.mxu0 %v23
  %56 = vmatprep.subr.mxu0 0.0
  %57 = vmatpush1.msra.mxu0 %v24
  %58 = vmatprep.subr.mxu0 0.0
  %59 = vmatpush1.msra.mxu0 %v25
  %60 = vmatprep.subr.mxu0 0.0
  %61 = vmatpush1.msra.mxu0 %v26
  %62 = vmatprep.subr.mxu0 0.0
  %63 = vmatpush1.msra.mxu0 %v27
  %64 = vmatprep.subr.mxu0 0.0
  %65 = vmatpush1.msra.mxu0 %v28
  %66 = vmatprep.subr.mxu0 0.0
  %67 = vmatpush1.msra.mxu0 %v29
  %68 = vmatprep.subr.mxu0 0.0
  %69 = vmatpush1.msra.mxu0 %v30
  %70 = vmatprep.subr.mxu0 0.0
  %71 = vmatpush1.msra.mxu0 0.0
  %72 = vmatprep.subr.mxu0 0.0
  %73 = vmatpush1.msra.mxu0 0.0
  %74 = vmatprep.subr.mxu0 0.0
  %75 = vmatpush1.msra.mxu0 0.0
  %76 = vmatprep.subr.mxu0 0.0
  %77 = vmatpush1.msra.mxu0 0.0
  %78 = vmatprep.subr.mxu0 0.0
  %79 = vmatpush1.msra.mxu0 0.0
  %80 = vmatprep.subr.mxu0 0.0
  %81 = vmatpush1.msra.mxu0 0.0
  %82 = vmatprep.subr.mxu0 0.0
  %83 = vmatpush1.msra.mxu0 0.0
  %84 = vmatprep.subr.mxu0 0.0
  %85 = vmatpush1.msra.mxu0 0.0
  %86 = vmatprep.subr.mxu0 0.0
  %87 = vmatpush1.msra.mxu0 0.0
  %88 = vmatprep.subr.mxu0 0.0
  %89 = vmatpush1.msra.mxu0 0.0
  %90 = vmatprep.subr.mxu0 0.0
  %91 = vmatpush1.msra.mxu0 0.0
  %92 = vmatprep.subr.mxu0 0.0
  %93 = vmatpush1.msra.mxu0 0.0
  %94 = vmatprep.subr.mxu0 0.0
  %95 = vmatpush1.msra.mxu0 0.0
  %96 = vmatprep.subr.mxu0 0.0
  %97 = vmatpush1.msra.mxu0 0.0
  %98 = vmatprep.subr.mxu0 0.0
  %99 = vmatpush1.msra.mxu0 0.0
  %100 = vmatprep.subr.mxu0 0.0
  %101 = vmatpush1.msra.mxu0 0.0
  %102 = vmatprep.mubr.f32.mxu0 0.0
  %103 = vmatmul.mubr.f32.gmra.mrb[0].mxu0 %v14
  %v104 = vpop.f32.mrb[0].mxu0
  %v105 = vadd.f32 %v36, %v104
  %v106 = vpop.f32.mrb[0].mxu0
  %107 = vdwg.mxu0
  %108 = vst [vmem:[%s3] sm:$0xff] %v105
  // Predicated region
  $region14: #{net_forward.1} parent=0 // pred_check
    _
  $region15: #{net_forward.1} parent=0 // pred_check_branch
    %110 = sbr.rel (0) target = $region17
  $region16: #{net_forward.1} parent=0 // pred_region
    _
  $region17: #{net_forward.1} parent=0 // pred_fallthru
    _
  // Predicated region
  $region18: #{net_forward.1} parent=0 // pred_check
    _
  $region19: #{net_forward.1} parent=0 // pred_check_branch
    %112 = sbr.rel (0) target = $region21
  $region20: #{net_forward.1} parent=0 // pred_region
    _
  $region21: #{net_forward.1} parent=0 // pred_fallthru
    _

</llo_original>
